<compile_context>
chip_gen: v6e
topology: v6e:2x2x1
jax: 0.10.0
libtpu: 0.0.40
codegen_flags: <defaults>
</compile_context>

<pallas_src>
import jax
import jax.numpy as jnp
from jax.experimental import pallas as pl
from jax.experimental.pallas import tpu as pltpu

EPS = 1e-5


# ---------------------------------------------------------------------------
# Stage 1: streamed global average pool (as a sum; 1/HW folded into w_red).
# Input is the free (B, C, HW) view of the NCHW feature map.
# ---------------------------------------------------------------------------
def _pool_kernel(x_ref, pooled_ref):
    # grid = (C_blocks [parallel], HW_blocks [arbitrary / reduction])
    @pl.when(pl.program_id(1) == 0)
    def _():
        pooled_ref[...] = jnp.zeros_like(pooled_ref)

    # (B, c_tile, hw_tile): reduce HW (the lane axis).  Stage 1 is DMA-bound
    # (~1 add per 4 HBM bytes), so the XLU lane reduce is hidden under the DMA.
    pooled_ref[...] += jnp.sum(x_ref[...].astype(jnp.float32), axis=2)


# ---------------------------------------------------------------------------
# Stage 2: tiny head — reduction matmul, BN (a*x+c form), two lane-dense dots
# for fc and embed, embed BN.  Everything 128-padded so all stores are
# unmasked; padded columns stay exactly zero (gamma/beta/weight pads are 0).
# ---------------------------------------------------------------------------
def _head_kernel(pooled_ref, w_red_ref, b_red_ref, gamma_ref, beta_ref,
                 w_fc_ref, b_fc_ref, w_emb_ref, b_emb_ref,
                 gamma_e_ref, beta_e_ref, out_ref, feat_ref):
    pooled = pooled_ref[...]                       # (B, C) spatial SUM (1/HW folded in w_red)

    # reduction: Conv2d(C, F, 1) applied to a 1x1 pooled map == matmul
    red = jnp.dot(pooled, w_red_ref[...], preferred_element_type=jnp.float32)
    red = red + b_red_ref[...]                     # (B, Fp)

    # self.bn: BatchNorm1d, training-mode batch stats, bias frozen at 0.
    # Rewritten as a*x + c (padded columns: gamma=0 -> a=0, c=0 -> stay 0).
    mu = jnp.mean(red, axis=0, keepdims=True)
    var = jnp.mean((red - mu) * (red - mu), axis=0, keepdims=True)
    a = gamma_ref[...] * jax.lax.rsqrt(var + EPS)
    c = beta_ref[...] - a * mu
    fc_in = a * red + c

    # self.fc: Linear on the post-BN features -> padded logits (lane-dense).
    out_ref[...] = jnp.dot(fc_in, w_fc_ref[...],
                           preferred_element_type=jnp.float32) + b_fc_ref[...]

    # self.embed: Linear (on PRE-bn features) -> BatchNorm1d(feat_dim).
    emb = jnp.dot(red, w_emb_ref[...],
                  preferred_element_type=jnp.float32) + b_emb_ref[...]
    mu_e = jnp.mean(emb, axis=0, keepdims=True)
    var_e = jnp.mean((emb - mu_e) * (emb - mu_e), axis=0, keepdims=True)
    a_e = gamma_e_ref[...] * jax.lax.rsqrt(var_e + EPS)
    c_e = beta_e_ref[...] - a_e * mu_e
    feat_ref[...] = a_e * emb + c_e


# ---------------------------------------------------------------------------
# Parameter prep (run ONCE, hoisted out of the per-forward-call path).
# ---------------------------------------------------------------------------
def _round_up(x, m):
    return ((x + m - 1) // m) * m


def _pad2(a, rows, cols):
    a = jnp.asarray(a, jnp.float32)
    return jnp.pad(a, ((0, rows - a.shape[0]), (0, cols - a.shape[1])))


def prepare_params(params, hw):
    """Pad / pre-scale parameters once. `hw` = H*W of the backbone feature map."""
    C, F_ = params["w_red"].shape
    NC = params["w_fc"].shape[1]
    FD = params["w_emb"].shape[1]
    Fp, NCp, FDp = _round_up(F_, 128), _round_up(NC, 128), _round_up(FD, 128)
    inv_hw = 1.0 / float(hw)
    prepped = dict(
        w_red=_pad2(params["w_red"] * inv_hw, C, Fp),   # fold 1/HW of the mean here
        b_red=_pad2(params["b_red"], 1, Fp),
        gamma=_pad2(params["gamma"], 1, Fp),
        beta=_pad2(params["beta"], 1, Fp),
        w_fc=_pad2(params["w_fc"], Fp, NCp),
        b_fc=_pad2(params["b_fc"], 1, NCp),
        w_emb=_pad2(params["w_emb"], Fp, FDp),
        b_emb=_pad2(params["b_emb"], 1, FDp),
        gamma_e=_pad2(params["gamma_e"], 1, FDp),
        beta_e=_pad2(params["beta_e"], 1, FDp),
    )
    return prepped, dict(NC=NC, FD=FD)


# ---------------------------------------------------------------------------
# Generation-aware tile / VMEM budgets.
# ---------------------------------------------------------------------------
def _vmem_capacity():
    try:
        return int(pltpu.get_tpu_info().vmem_capacity_bytes)
    except Exception:
        return 64 << 20  # conservative (v7x-sized) fallback


def _select_c_tile(C):
    # c_tile must be a 128-multiple dividing C (lane-dense pooled store) or C
    # itself.  Prefer >= 2 C blocks so the "parallel" axis can shard across
    # v7x's two TensorCores.
    cands = [t for t in (512, 384, 256, 128) if C % t == 0]
    for t in cands:
        if C // t >= 2:
            return t
    return cands[0] if cands else C


def _select_hw_tile(HW, per_hw_bytes, budget):
    # hw_tile must be a 128-multiple dividing HW, or HW itself; largest that
    # fits the per-buffer budget (pipeline double-buffers the input).
    cands = [t for t in (32768, 16384, 8192, 4096, 2048, 1024, 512, 256, 128)
             if HW % t == 0]
    for t in cands:
        if t * per_hw_bytes <= budget:
            return t
    return cands[-1] if cands else HW


# ---------------------------------------------------------------------------
# Forward wrapper.
# ---------------------------------------------------------------------------
def cls_model_head(x_nchw, prepped, *, num_classes, feat_dim,
                   hw_tile=None, c_tile=None):
    """x_nchw: (B, C, H, W) backbone features (f32 or bf16). Returns (logits, feat)."""
    B, C, H, W = x_nchw.shape
    HW = H * W
    assert B > 1, "training-mode BatchNorm1d batch stats need batch > 1"

    p = prepped
    Fp = p["w_red"].shape[1]
    NCp = p["w_fc"].shape[1]
    FDp = p["w_emb"].shape[1]
    assert p["w_red"].shape[0] == C

    # Free view of the NCHW tensor — no transpose, no extra HBM pass.
    x = x_nchw.reshape(B, C, HW)
    itemsize = jnp.dtype(x.dtype).itemsize

    cap = _vmem_capacity()
    x_budget = max(2 << 20, cap // 8)   # per x pipeline buffer (double-buffered)

    if c_tile is None:
        c_tile = _select_c_tile(C)
    if hw_tile is None:
        hw_tile = _select_hw_tile(HW, B * c_tile * itemsize, x_budget)
    assert C % c_tile == 0 and HW % hw_tile == 0
    n_c, n_hw = C // c_tile, HW // hw_tile

    resident = 2 * B * c_tile * hw_tile * itemsize + 2 * B * c_tile * 4
    vmem_limit = max(cap * 3 // 4, resident + (4 << 20))
    vmem_limit = int(min(vmem_limit, cap - (4 << 20)))

    # --- stage 1: streamed pool (sum over HW) ---
    pooled = pl.pallas_call(
        _pool_kernel,
        out_shape=jax.ShapeDtypeStruct((B, C), jnp.float32),
        grid=(n_c, n_hw),
        in_specs=[pl.BlockSpec((B, c_tile, hw_tile), lambda c, k: (0, c, k))],
        out_specs=pl.BlockSpec((B, c_tile), lambda c, k: (0, c)),
        compiler_params=pltpu.CompilerParams(
            dimension_semantics=("parallel", "arbitrary"),
            vmem_limit_bytes=vmem_limit,
        ),
    )(x)

    # --- stage 2: tiny head (reduction + BN + fc + embed + embed BN) ---
    head_bytes = 4 * (B * C + C * Fp + 3 * Fp + Fp * NCp + NCp
                      + Fp * FDp + 3 * FDp + B * NCp + B * FDp)
    head_vmem = int(min(cap - (4 << 20), max(16 << 20, 2 * head_bytes + (2 << 20))))

    full = lambda shape: pl.BlockSpec(shape, lambda: (0,) * len(shape))
    out_pad, feat_pad = pl.pallas_call(
        _head_kernel,
        out_shape=(
            jax.ShapeDtypeStruct((B, NCp), jnp.float32),
            jax.ShapeDtypeStruct((B, FDp), jnp.float32),
        ),
        grid=(),
        in_specs=[
            full((B, C)),
            full((C, Fp)), full((1, Fp)), full((1, Fp)), full((1, Fp)),
            full((Fp, NCp)), full((1, NCp)),
            full((Fp, FDp)), full((1, FDp)),
            full((1, FDp)), full((1, FDp)),
        ],
        out_specs=(full((B, NCp)), full((B, FDp))),
        compiler_params=pltpu.CompilerParams(vmem_limit_bytes=head_vmem),
    )(pooled, p["w_red"], p["b_red"], p["gamma"], p["beta"],
      p["w_fc"], p["b_fc"], p["w_emb"], p["b_emb"],
      p["gamma_e"], p["beta_e"])

    return out_pad[:, :num_classes], feat_pad[:, :feat_dim]


# ---------------------------------------------------------------------------
# Params / reference / test
# ---------------------------------------------------------------------------
def init_params(key, C, F_, NC, FD):
    ks = jax.random.split(key, 6)
    scale = 0.05
    return {
        # Conv2d(C, F, 1) weight is (F, C, 1, 1) in torch; stored transposed (C, F).
        "w_red": scale * jax.random.normal(ks[0], (C, F_), jnp.float32),
        "b_red": scale * jax.random.normal(ks[1], (1, F_), jnp.float32),
        "gamma": jnp.ones((1, F_), jnp.float32),
        "beta": jnp.zeros((1, F_), jnp.float32),  # nn.init.zeros_(self.bn.bias)
        "w_fc": scale * jax.random.normal(ks[2], (F_, NC), jnp.float32),
        "b_fc": scale * jax.random.normal(ks[3], (1, NC), jnp.float32),
        "w_emb": scale * jax.random.normal(ks[4], (F_, FD), jnp.float32),
        "b_emb": scale * jax.random.normal(ks[5], (1, FD), jnp.float32),
        "gamma_e": jnp.ones((1, FD), jnp.float32),
        "beta_e": jnp.zeros((1, FD), jnp.float32),
    }


def reference(x_nchw, p):
    B, C, H, W = x_nchw.shape
    pooled = jnp.mean(x_nchw.reshape(B, C, H * W), axis=-1)
    red = pooled @ p["w_red"] + p["b_red"]
    mu = jnp.mean(red, axis=0, keepdims=True)
    var = jnp.mean((red - mu) ** 2, axis=0, keepdims=True)
    fc_in = p["gamma"] * (red - mu) / jnp.sqrt(var + EPS) + p["beta"]
    out = fc_in @ p["w_fc"] + p["b_fc"]
    emb = red @ p["w_emb"] + p["b_emb"]
    mu_e = jnp.mean(emb, axis=0, keepdims=True)
    var_e = jnp.mean((emb - mu_e) ** 2, axis=0, keepdims=True)
    feat = p["gamma_e"] * (emb - mu_e) / jnp.sqrt(var_e + EPS) + p["beta_e"]
    return out, feat


if __name__ == "__main__":
    key = jax.random.PRNGKey(0)
    k_x, k_p = jax.random.split(key)

    # Small shapes: backbone features (B=8, C=32, H=W=16),
    # fc_dim_out=16, num_classes=10, feat_dim=8.
    B, C, H, W = 8, 32, 16, 16
    F_, NC, FD = 16, 10, 8

    x = jax.random.normal(k_x, (B, C, H, W), jnp.float32)
    params = init_params(k_p, C, F_, NC, FD)

    # Padding / 1/HW-scaling done ONCE, outside the per-call path.
    prepped, dims = prepare_params(params, H * W)

    head_fn = jax.jit(cls_model_head,
                      static_argnames=("num_classes", "feat_dim",
                                       "hw_tile", "c_tile"))

    # f32 run; hw_tile=128 forces a 2-step streamed HW reduction.
    out, feat = head_fn(x, prepped, num_classes=dims["NC"], feat_dim=dims["FD"],
                        hw_tile=128)
    jax.block_until_ready((out, feat))
    out_ref, feat_ref = reference(x, params)
    assert out.shape == out_ref.shape and feat.shape == feat_ref.shape
    assert jnp.allclose(out, out_ref, atol=1e-4, rtol=1e-4)
    assert jnp.allclose(feat, feat_ref, atol=1e-4, rtol=1e-4)

    # bf16 feature map (cast at the backbone boundary) halves stage-1 HBM
    # traffic; accumulation stays f32 inside the kernel.
    x_bf16 = x.astype(jnp.bfloat16)
    out_b, feat_b = head_fn(x_bf16, prepped, num_classes=dims["NC"],
                            feat_dim=dims["FD"], hw_tile=128)
    jax.block_until_ready((out_b, feat_b))
    out_ref_b, feat_ref_b = reference(x_bf16.astype(jnp.float32), params)
    assert jnp.allclose(out_b, out_ref_b, atol=1e-2, rtol=1e-2)
    assert jnp.allclose(feat_b, feat_ref_b, atol=1e-2, rtol=1e-2)

    print("KERNEL_OK")
</pallas_src>

<mosaic_0001>
module attributes {stable_mosaic.version = 11 : i64} {
  func.func @_head_kernel(%arg0: memref<8x32xf32, #tpu.memory_space<vmem>>, %arg1: memref<32x128xf32, #tpu.memory_space<vmem>>, %arg2: memref<1x128xf32, #tpu.memory_space<vmem>>, %arg3: memref<1x128xf32, #tpu.memory_space<vmem>>, %arg4: memref<1x128xf32, #tpu.memory_space<vmem>>, %arg5: memref<128x128xf32, #tpu.memory_space<vmem>>, %arg6: memref<1x128xf32, #tpu.memory_space<vmem>>, %arg7: memref<128x128xf32, #tpu.memory_space<vmem>>, %arg8: memref<1x128xf32, #tpu.memory_space<vmem>>, %arg9: memref<1x128xf32, #tpu.memory_space<vmem>>, %arg10: memref<1x128xf32, #tpu.memory_space<vmem>>, %arg11: memref<8x128xf32, #tpu.memory_space<vmem>>, %arg12: memref<8x128xf32, #tpu.memory_space<vmem>>) attributes {dimension_semantics = [], scalar_prefetch = 0 : i64, scratch_operands = 0 : i64, tpu.core_type = #tpu.core_type<tc>} {
    %c0 = arith.constant 0 : index
    %c0_0 = arith.constant 0 : index
    %0 = vector.load %arg0[%c0, %c0_0] : memref<8x32xf32, #tpu.memory_space<vmem>>, vector<8x32xf32>
    %c0_1 = arith.constant 0 : index
    %c0_2 = arith.constant 0 : index
    %1 = vector.load %arg1[%c0_1, %c0_2] : memref<32x128xf32, #tpu.memory_space<vmem>>, vector<32x128xf32>
    %cst = arith.constant dense<0.000000e+00> : vector<8x128xf32>
    %2 = tpu.matmul %0, %1, %cst {dimension_numbers = #tpu.dot_dimension_numbers<[1], [0], [0], [1], [0, 0, 1, 1], [], []>} : vector<8x32xf32>, vector<32x128xf32>, vector<8x128xf32> -> vector<8x128xf32>
    %c0_3 = arith.constant 0 : index
    %c0_4 = arith.constant 0 : index
    %3 = vector.load %arg2[%c0_3, %c0_4] : memref<1x128xf32, #tpu.memory_space<vmem>>, vector<1x128xf32>
    %4 = vector.broadcast %3 : vector<1x128xf32> to vector<8x128xf32>
    %5 = arith.addf %2, %4 : vector<8x128xf32>
    %cst_5 = arith.constant dense<0.000000e+00> : vector<128xf32>
    %6 = vector.multi_reduction <add>, %5, %cst_5 [0] : vector<8x128xf32> to vector<128xf32>
    %7 = vector.shape_cast %6 : vector<128xf32> to vector<1x128xf32>
    %cst_6 = arith.constant 8.000000e+00 : f32
    %8 = vector.broadcast %cst_6 : f32 to vector<1x128xf32>
    %9 = arith.divf %7, %8 : vector<1x128xf32>
    %10 = vector.broadcast %9 : vector<1x128xf32> to vector<8x128xf32>
    %11 = arith.subf %5, %10 : vector<8x128xf32>
    %12 = vector.broadcast %9 : vector<1x128xf32> to vector<8x128xf32>
    %13 = arith.subf %5, %12 : vector<8x128xf32>
    %14 = arith.mulf %11, %13 : vector<8x128xf32>
    %cst_7 = arith.constant dense<0.000000e+00> : vector<128xf32>
    %15 = vector.multi_reduction <add>, %14, %cst_7 [0] : vector<8x128xf32> to vector<128xf32>
    %16 = vector.shape_cast %15 : vector<128xf32> to vector<1x128xf32>
    %cst_8 = arith.constant 8.000000e+00 : f32
    %17 = vector.broadcast %cst_8 : f32 to vector<1x128xf32>
    %18 = arith.divf %16, %17 : vector<1x128xf32>
    %c0_9 = arith.constant 0 : index
    %c0_10 = arith.constant 0 : index
    %19 = vector.load %arg3[%c0_9, %c0_10] : memref<1x128xf32, #tpu.memory_space<vmem>>, vector<1x128xf32>
    %cst_11 = arith.constant 9.99999974E-6 : f32
    %20 = vector.broadcast %cst_11 : f32 to vector<1x128xf32>
    %21 = arith.addf %18, %20 : vector<1x128xf32>
    %22 = math.rsqrt %21 : vector<1x128xf32>
    %23 = arith.mulf %19, %22 : vector<1x128xf32>
    %c0_12 = arith.constant 0 : index
    %c0_13 = arith.constant 0 : index
    %24 = vector.load %arg4[%c0_12, %c0_13] : memref<1x128xf32, #tpu.memory_space<vmem>>, vector<1x128xf32>
    %25 = arith.mulf %23, %9 : vector<1x128xf32>
    %26 = arith.subf %24, %25 : vector<1x128xf32>
    %27 = vector.broadcast %23 : vector<1x128xf32> to vector<8x128xf32>
    %28 = arith.mulf %27, %5 : vector<8x128xf32>
    %29 = vector.broadcast %26 : vector<1x128xf32> to vector<8x128xf32>
    %30 = arith.addf %28, %29 : vector<8x128xf32>
    %c0_14 = arith.constant 0 : index
    %c0_15 = arith.constant 0 : index
    %31 = vector.load %arg5[%c0_14, %c0_15] : memref<128x128xf32, #tpu.memory_space<vmem>>, vector<128x128xf32>
    %cst_16 = arith.constant dense<0.000000e+00> : vector<8x128xf32>
    %32 = tpu.matmul %30, %31, %cst_16 {dimension_numbers = #tpu.dot_dimension_numbers<[1], [0], [0], [1], [0, 0, 1, 1], [], []>} : vector<8x128xf32>, vector<128x128xf32>, vector<8x128xf32> -> vector<8x128xf32>
    %c0_17 = arith.constant 0 : index
    %c0_18 = arith.constant 0 : index
    %33 = vector.load %arg6[%c0_17, %c0_18] : memref<1x128xf32, #tpu.memory_space<vmem>>, vector<1x128xf32>
    %34 = vector.broadcast %33 : vector<1x128xf32> to vector<8x128xf32>
    %35 = arith.addf %32, %34 : vector<8x128xf32>
    %c0_19 = arith.constant 0 : index
    %c0_20 = arith.constant 0 : index
    %36 = vector.load %arg11[%c0_19, %c0_20] : memref<8x128xf32, #tpu.memory_space<vmem>>, vector<8x128xf32>
    tpu.vector_store %arg11[%c0_19, %c0_20], %35 {strides = array<i32>} : memref<8x128xf32, #tpu.memory_space<vmem>>, vector<8x128xf32>,
    %c0_21 = arith.constant 0 : index
    %c0_22 = arith.constant 0 : index
    %37 = vector.load %arg7[%c0_21, %c0_22] : memref<128x128xf32, #tpu.memory_space<vmem>>, vector<128x128xf32>
    %cst_23 = arith.constant dense<0.000000e+00> : vector<8x128xf32>
    %38 = tpu.matmul %5, %37, %cst_23 {dimension_numbers = #tpu.dot_dimension_numbers<[1], [0], [0], [1], [0, 0, 1, 1], [], []>} : vector<8x128xf32>, vector<128x128xf32>, vector<8x128xf32> -> vector<8x128xf32>
    %c0_24 = arith.constant 0 : index
    %c0_25 = arith.constant 0 : index
    %39 = vector.load %arg8[%c0_24, %c0_25] : memref<1x128xf32, #tpu.memory_space<vmem>>, vector<1x128xf32>
    %40 = vector.broadcast %39 : vector<1x128xf32> to vector<8x128xf32>
    %41 = arith.addf %38, %40 : vector<8x128xf32>
    %cst_26 = arith.constant dense<0.000000e+00> : vector<128xf32>
    %42 = vector.multi_reduction <add>, %41, %cst_26 [0] : vector<8x128xf32> to vector<128xf32>
    %43 = vector.shape_cast %42 : vector<128xf32> to vector<1x128xf32>
    %cst_27 = arith.constant 8.000000e+00 : f32
    %44 = vector.broadcast %cst_27 : f32 to vector<1x128xf32>
    %45 = arith.divf %43, %44 : vector<1x128xf32>
    %46 = vector.broadcast %45 : vector<1x128xf32> to vector<8x128xf32>
    %47 = arith.subf %41, %46 : vector<8x128xf32>
    %48 = vector.broadcast %45 : vector<1x128xf32> to vector<8x128xf32>
    %49 = arith.subf %41, %48 : vector<8x128xf32>
    %50 = arith.mulf %47, %49 : vector<8x128xf32>
    %cst_28 = arith.constant dense<0.000000e+00> : vector<128xf32>
    %51 = vector.multi_reduction <add>, %50, %cst_28 [0] : vector<8x128xf32> to vector<128xf32>
    %52 = vector.shape_cast %51 : vector<128xf32> to vector<1x128xf32>
    %cst_29 = arith.constant 8.000000e+00 : f32
    %53 = vector.broadcast %cst_29 : f32 to vector<1x128xf32>
    %54 = arith.divf %52, %53 : vector<1x128xf32>
    %c0_30 = arith.constant 0 : index
    %c0_31 = arith.constant 0 : index
    %55 = vector.load %arg9[%c0_30, %c0_31] : memref<1x128xf32, #tpu.memory_space<vmem>>, vector<1x128xf32>
    %cst_32 = arith.constant 9.99999974E-6 : f32
    %56 = vector.broadcast %cst_32 : f32 to vector<1x128xf32>
    %57 = arith.addf %54, %56 : vector<1x128xf32>
    %58 = math.rsqrt %57 : vector<1x128xf32>
    %59 = arith.mulf %55, %58 : vector<1x128xf32>
    %c0_33 = arith.constant 0 : index
    %c0_34 = arith.constant 0 : index
    %60 = vector.load %arg10[%c0_33, %c0_34] : memref<1x128xf32, #tpu.memory_space<vmem>>, vector<1x128xf32>
    %61 = arith.mulf %59, %45 : vector<1x128xf32>
    %62 = arith.subf %60, %61 : vector<1x128xf32>
    %63 = vector.broadcast %59 : vector<1x128xf32> to vector<8x128xf32>
    %64 = arith.mulf %63, %41 : vector<8x128xf32>
    %65 = vector.broadcast %62 : vector<1x128xf32> to vector<8x128xf32>
    %66 = arith.addf %64, %65 : vector<8x128xf32>
    %c0_35 = arith.constant 0 : index
    %c0_36 = arith.constant 0 : index
    %67 = vector.load %arg12[%c0_35, %c0_36] : memref<8x128xf32, #tpu.memory_space<vmem>>, vector<8x128xf32>
    tpu.vector_store %arg12[%c0_35, %c0_36], %66 {strides = array<i32>} : memref<8x128xf32, #tpu.memory_space<vmem>>, vector<8x128xf32>,
    return
  }
}

module attributes {stable_mosaic.version = 11 : i64} {
  func.func @_pool_kernel(%arg0: i32, %arg1: i32, %arg2: memref<8x32x128xf32, #tpu.memory_space<vmem>>, %arg3: memref<8x32xf32, #tpu.memory_space<vmem>>) attributes {dimension_semantics = [#tpu.dimension_semantics<parallel>, #tpu.dimension_semantics<arbitrary>], iteration_bounds = array<i64: 1, 2>, scalar_prefetch = 0 : i64, scratch_operands = 0 : i64, tpu.core_type = #tpu.core_type<tc>, window_params = [{transform_indices = @transform_0, window_bounds = array<i64: 8, 32, 128>}, {transform_indices = @transform_1, window_bounds = array<i64: 8, 32>}]} {
    %c0_i32 = arith.constant 0 : i32
    %0 = arith.cmpi eq, %arg1, %c0_i32 : i32
    %1 = arith.extui %0 : i1 to i32
    %c0_i32_0 = arith.constant 0 : i32
    %2 = arith.cmpi ne, %1, %c0_i32_0 : i32
    scf.if %2 {
      %cst_7 = arith.constant 0.000000e+00 : f32
      %8 = vector.broadcast %cst_7 : f32 to vector<8x32xf32>
      %c0_8 = arith.constant 0 : index
      %c0_9 = arith.constant 0 : index
      %9 = vector.load %arg3[%c0_8, %c0_9] : memref<8x32xf32, #tpu.memory_space<vmem>>, vector<8x32xf32>
      tpu.vector_store %arg3[%c0_8, %c0_9], %8 {strides = array<i32>} : memref<8x32xf32, #tpu.memory_space<vmem>>, vector<8x32xf32>,
    } else {
    }
    %c0 = arith.constant 0 : index
    %c0_1 = arith.constant 0 : index
    %3 = vector.load %arg3[%c0, %c0_1] : memref<8x32xf32, #tpu.memory_space<vmem>>, vector<8x32xf32>
    %c0_2 = arith.constant 0 : index
    %c0_3 = arith.constant 0 : index
    %c0_4 = arith.constant 0 : index
    %4 = vector.load %arg2[%c0_2, %c0_3, %c0_4] : memref<8x32x128xf32, #tpu.memory_space<vmem>>, vector<8x32x128xf32>
    %cst = arith.constant dense<0.000000e+00> : vector<8x32xf32>
    %5 = vector.multi_reduction <add>, %4, %cst [2] : vector<8x32x128xf32> to vector<8x32xf32>
    %6 = arith.addf %3, %5 : vector<8x32xf32>
    %c0_5 = arith.constant 0 : index
    %c0_6 = arith.constant 0 : index
    %7 = vector.load %arg3[%c0_5, %c0_6] : memref<8x32xf32, #tpu.memory_space<vmem>>, vector<8x32xf32>
    tpu.vector_store %arg3[%c0_5, %c0_6], %6 {strides = array<i32>} : memref<8x32xf32, #tpu.memory_space<vmem>>, vector<8x32xf32>,
    return
  }
  func.func @transform_0(%arg0: i32, %arg1: i32) -> (i32, i32, i32) {
    %c0_i32 = arith.constant 0 : i32
    %c0_i32_0 = arith.constant 0 : i32
    return %c0_i32, %arg0, %arg1 : i32, i32, i32
  }
  func.func @transform_1(%arg0: i32, %arg1: i32) -> (i32, i32) {
    %c0_i32 = arith.constant 0 : i32
    %c0_i32_0 = arith.constant 0 : i32
    return %c0_i32, %arg0 : i32, i32
  }
}

</mosaic_0001>

<llo_original>
// kernel: cls_model_head.2
$region0: #{cls_model_head.2}
  #allocation0 [shape = 'u32[]', space=smem, size = 0x4, offset = 0x4, fixed_abs, tag = 'smem constant byte address 0x4 - core index']
  #allocation1 [shape = 'u32[144,128]{1,0:T(1,128)}', space=vmem, size = 0x12000, scoped, tag = 'internal scratch']
  %s0 = inlined_call_operand.vmem [shape: f32[8,32,256], index: 0, kind: input, shape index: {}]
  %s1 = inlined_call_operand.vmem [shape: f32[8,32], index: 1, kind: output, shape index: {}]
  %s2 = sld [smem:[#allocation0]]
  $region79: #{cls_model_head.2} parent=0
    _
  %s4 = ssub.s32 1, %s2
  %s5 = scalar_select 0, %s4, %s2
  $region1: #{cls_model_head.2} parent=0
    #allocation2 [shape = 'u8[262144]{0}', space=vmem, size = 0x40000, scoped, tag = 'input window, operand 0']
    loop: start=0, step=1, limit=4
    $region2: #{cls_model_head.2} parent=1 // loop_pre_header
      _
    $region3: #{cls_model_head.2} parent=1 // loop_header
      %s7 = sphi 0, %s11
      %p8 = scmp.ge.s32.totalorder %s7, 4
      %s14 = sphi 0, %s26
      %s15 = sphi 0, %s22
      %s16 = sphi 0, %s14
      %s17 = sphi 0, %s15
      %s18 = sphi 0, %s16
      %s19 = sphi 0, %s17
      %s31 = sphi 0, %s33
      %s34 = sphi 0, %s31
      %s35 = sphi 0, %s34
      %s51 = sphi 0, %s35
      %s57 = sphi 0, %s59
      %s60 = sphi 0, %s57
      %s61 = sphi 0, %s60
      %s77 = sphi 0, %s61
    $region4: #{cls_model_head.2} parent=1 // loop_header_branch
      %10 = sbr.rel (%p8) target = $region8
    $region5: #{cls_model_head.2} parent=1 // loop_body
      %s12 = ssub.s32 %s7, 1
      %s13 = ssub.s32 %s7, 2
      %s20 = sadd.s32 1, %s15
      %p21 = scmp.ge.s32.totalorder %s20, 2
      %s22 = scalar_select %p21, 0, %s20
      %s23 = sadd.s32 1, %s14
      %s24 = scalar_select %p21, %s23, %s14
      %p25 = scmp.ge.s32.totalorder %s24, 1
      %s26 = scalar_select %p25, 0, %s24
      %s27 = ssub.s32 %s14, %s26
      %s28 = ssub.s32 %s15, %s22
      %s29 = sor.u32 %s27, %s28
      %p30 = scmp.eq.s32.totalorder %s29, 0
      %s32 = sadd.s32 %s31, 1
      %s33 = scalar_select %p30, %s31, %s32
      %p36 = pneg %p30
      %p37 = scmp.eq.s32.totalorder %s7, 1
      %p38 = por %p36, %p37
      %p39 = scmp.ne.s32.totalorder %s31, %s34
      %p40 = scmp.eq.s32.totalorder %s7, 0
      %p41 = por %p39, %p40
      %p42 = scmp.ne.s32.totalorder %s31, %s34
      %p43 = scmp.eq.s32.totalorder %s12, 1
      %p44 = por %p42, %p43
      %p45 = scmp.ne.s32.totalorder %s34, %s35
      %p46 = scmp.eq.s32.totalorder %s12, 0
      %p47 = por %p45, %p46
      %p48 = scmp.ne.s32.totalorder %s34, %s35
      %p49 = scmp.eq.s32.totalorder %s13, 1
      %p50 = por %p48, %p49
      %p52 = scmp.ne.s32.totalorder %s35, %s51
      %p53 = scmp.eq.s32.totalorder %s13, 0
      %p54 = por %p52, %p53
      %s55 = ssub.s32 %s14, %s26
      %p56 = scmp.eq.s32.totalorder %s55, 0
      %s58 = sadd.s32 %s57, 1
      %s59 = scalar_select %p56, %s57, %s58
      %p62 = pneg %p56
      %p63 = scmp.eq.s32.totalorder %s7, 1
      %p64 = por %p62, %p63
      %p65 = scmp.ne.s32.totalorder %s57, %s60
      %p66 = scmp.eq.s32.totalorder %s7, 0
      %p67 = por %p65, %p66
      %p68 = scmp.ne.s32.totalorder %s57, %s60
      %p69 = scmp.eq.s32.totalorder %s12, 1
      %p70 = por %p68, %p69
      %p71 = scmp.ne.s32.totalorder %s60, %s61
      %p72 = scmp.eq.s32.totalorder %s12, 0
      %p73 = por %p71, %p72
      %p74 = scmp.ne.s32.totalorder %s60, %s61
      %p75 = scmp.eq.s32.totalorder %s13, 1
      %p76 = por %p74, %p75
      %p78 = scmp.ne.s32.totalorder %s61, %s77
      %p79 = scmp.eq.s32.totalorder %s13, 0
      %p80 = por %p78, %p79
      %p81 = scmp.le.s32.totalorder 1, %s7
      %p82 = scmp.lt.s32.totalorder %s7, 3
      %p83 = pnand %p81, %p82
      %p84 = pneg %p83
      // Predicated region
      $region9: #{cls_model_head.2} parent=5 // pred_check
        _
      $region10: #{cls_model_head.2} parent=5 // pred_check_branch
        %86 = sbr.rel (%p83) target = $region12
      $region11: #{cls_model_head.2} parent=5 // pred_region
        %s87 = ssub.s32 %s7, 1
      $region12: #{cls_model_head.2} parent=5 // pred_fallthru
        _
      %p88 = scmp.lt.s32.totalorder %s7, 2
      // Predicated region
      $region13: #{cls_model_head.2} parent=5 // pred_check
        %p89 = pneg %p88
      $region14: #{cls_model_head.2} parent=5 // pred_check_branch
        %91 = sbr.rel (%p89) target = $region16
      $region15: #{cls_model_head.2} parent=5 // pred_region
        // Predicated region
        $region17: #{cls_model_head.2} parent=15 // pred_check
          %p92 = pneg %p41
        $region18: #{cls_model_head.2} parent=15 // pred_check_branch
          %94 = sbr.rel (%p92) target = $region20
        $region19: #{cls_model_head.2} parent=15 // pred_region
          %s95 = sand.u32 %s31, 1
          %s96 = sand.u32 %s31, 1
          %s97 = smul.addr %s96, 256
          %s98 = scalar_lea.vmem [#allocation2], %s97
          %s99 = smul.u32 4, %s14
          %s100 = smul.addr %s99, 2
          %s101 = sadd.s32 %s15, %s100
          %s102 = smul.addr %s101, 8
          %s103 = scalar_lea.vmem %s0, %s102
          // Predicated region
          $region21: #{cls_model_head.2} parent=19 // pred_check
            _
          $region22: #{cls_model_head.2} parent=19 // pred_check_branch
            %105 = sbr.rel (0) target = $region24
          $region23: #{cls_model_head.2} parent=19 // pred_region
            // Predicated region
            $region25: #{cls_model_head.2} parent=23 // pred_check
              _
            $region26: #{cls_model_head.2} parent=23 // pred_check_branch
              %107 = sbr.rel (0) target = $region28
            $region27: #{cls_model_head.2} parent=23 // pred_region
              // Predicated region
              $region40: #{cls_model_head.2} parent=27 // pred_check
                _
              $region41: #{cls_model_head.2} parent=27 // pred_check_branch
                %185 = sbr.rel (0) target = $region43
              $region42: #{cls_model_head.2} parent=27 // pred_region
                loop: start=0, step=1, limit=1
                $region44: #{cls_model_head.2} parent=42 // loop_pre_header
                  _
                $region45: #{cls_model_head.2} parent=42 // loop_header
                  %s187 = sphi 0, %s191
                  %p188 = scmp.ge.s32.totalorder %s187, 1
                  %s192 = sphi %s103, %s103
                  %s193 = sphi %s98, %s98
                $region46: #{cls_model_head.2} parent=42 // loop_header_branch
                  %190 = sbr.rel (%p188) target = $region50
                $region47: #{cls_model_head.2} parent=42 // loop_body
                  %v194 = vld [vmem:[%s192] sm:$0xff]
                  %195 = vst [vmem:[%s193] sm:$0xff] %v194
                  %v196 = vld [vmem:[%s192 + $0x10] sm:$0xff]
                  %197 = vst [vmem:[%s193 + $0x8] sm:$0xff] %v196
                  %v198 = vld [vmem:[%s192 + $0x20] sm:$0xff]
                  %199 = vst [vmem:[%s193 + $0x10] sm:$0xff] %v198
                  %v200 = vld [vmem:[%s192 + $0x30] sm:$0xff]
                  %201 = vst [vmem:[%s193 + $0x18] sm:$0xff] %v200
                  %v202 = vld [vmem:[%s192 + $0x40] sm:$0xff]
                  %203 = vst [vmem:[%s193 + $0x20] sm:$0xff] %v202
                  %v204 = vld [vmem:[%s192 + $0x50] sm:$0xff]
                  %205 = vst [vmem:[%s193 + $0x28] sm:$0xff] %v204
                  %v206 = vld [vmem:[%s192 + $0x60] sm:$0xff]
                  %207 = vst [vmem:[%s193 + $0x30] sm:$0xff] %v206
                  %v208 = vld [vmem:[%s192 + $0x70] sm:$0xff]
                  %209 = vst [vmem:[%s193 + $0x38] sm:$0xff] %v208
                  %v210 = vld [vmem:[%s192 + $0x80] sm:$0xff]
                  %211 = vst [vmem:[%s193 + $0x40] sm:$0xff] %v210
                  %v212 = vld [vmem:[%s192 + $0x90] sm:$0xff]
                  %213 = vst [vmem:[%s193 + $0x48] sm:$0xff] %v212
                  %v214 = vld [vmem:[%s192 + $0xa0] sm:$0xff]
                  %215 = vst [vmem:[%s193 + $0x50] sm:$0xff] %v214
                  %v216 = vld [vmem:[%s192 + $0xb0] sm:$0xff]
                  %217 = vst [vmem:[%s193 + $0x58] sm:$0xff] %v216
                  %v218 = vld [vmem:[%s192 + $0xc0] sm:$0xff]
                  %219 = vst [vmem:[%s193 + $0x60] sm:$0xff] %v218
                  %v220 = vld [vmem:[%s192 + $0xd0] sm:$0xff]
                  %221 = vst [vmem:[%s193 + $0x68] sm:$0xff] %v220
                  %v222 = vld [vmem:[%s192 + $0xe0] sm:$0xff]
                  %223 = vst [vmem:[%s193 + $0x70] sm:$0xff] %v222
                  %v224 = vld [vmem:[%s192 + $0xf0] sm:$0xff]
                  %225 = vst [vmem:[%s193 + $0x78] sm:$0xff] %v224
                  %v226 = vld [vmem:[%s192 + $0x100] sm:$0xff]
                  %227 = vst [vmem:[%s193 + $0x80] sm:$0xff] %v226
                  %v228 = vld [vmem:[%s192 + $0x110] sm:$0xff]
                  %229 = vst [vmem:[%s193 + $0x88] sm:$0xff] %v228
                  %v230 = vld [vmem:[%s192 + $0x120] sm:$0xff]
                  %231 = vst [vmem:[%s193 + $0x90] sm:$0xff] %v230
                  %v232 = vld [vmem:[%s192 + $0x130] sm:$0xff]
                  %233 = vst [vmem:[%s193 + $0x98] sm:$0xff] %v232
                  %v234 = vld [vmem:[%s192 + $0x140] sm:$0xff]
                  %235 = vst [vmem:[%s193 + $0xa0] sm:$0xff] %v234
                  %v236 = vld [vmem:[%s192 + $0x150] sm:$0xff]
                  %237 = vst [vmem:[%s193 + $0xa8] sm:$0xff] %v236
                  %v238 = vld [vmem:[%s192 + $0x160] sm:$0xff]
                  %239 = vst [vmem:[%s193 + $0xb0] sm:$0xff] %v238
                  %v240 = vld [vmem:[%s192 + $0x170] sm:$0xff]
                  %241 = vst [vmem:[%s193 + $0xb8] sm:$0xff] %v240
                  %v242 = vld [vmem:[%s192 + $0x180] sm:$0xff]
                  %243 = vst [vmem:[%s193 + $0xc0] sm:$0xff] %v242
                  %v244 = vld [vmem:[%s192 + $0x190] sm:$0xff]
                  %245 = vst [vmem:[%s193 + $0xc8] sm:$0xff] %v244
                  %v246 = vld [vmem:[%s192 + $0x1a0] sm:$0xff]
                  %247 = vst [vmem:[%s193 + $0xd0] sm:$0xff] %v246
                  %v248 = vld [vmem:[%s192 + $0x1b0] sm:$0xff]
                  %249 = vst [vmem:[%s193 + $0xd8] sm:$0xff] %v248
                  %v250 = vld [vmem:[%s192 + $0x1c0] sm:$0xff]
                  %251 = vst [vmem:[%s193 + $0xe0] sm:$0xff] %v250
                  %v252 = vld [vmem:[%s192 + $0x1d0] sm:$0xff]
                  %253 = vst [vmem:[%s193 + $0xe8] sm:$0xff] %v252
                  %v254 = vld [vmem:[%s192 + $0x1e0] sm:$0xff]
                  %255 = vst [vmem:[%s193 + $0xf0] sm:$0xff] %v254
                  %v256 = vld [vmem:[%s192 + $0x1f0] sm:$0xff]
                  %257 = vst [vmem:[%s193 + $0xf8] sm:$0xff] %v256
                $region48: #{cls_model_head.2} parent=42 // loop_footer
                  %s191 = sadd.s32 1, %s187
                $region49: #{cls_model_head.2} parent=42 // loop_footer_branch
                  %186 = sbr.rel target = $region45
                $region50: #{cls_model_head.2} parent=42 // loop_exit
                  _
              $region43: #{cls_model_head.2} parent=27 // pred_fallthru
                _
              // Predicated region
              $region51: #{cls_model_head.2} parent=27 // pred_check
                _
              $region52: #{cls_model_head.2} parent=27 // pred_check_branch
                %259 = sbr.rel target = $region54
              $region53: #{cls_model_head.2} parent=27 // pred_region
                _
              $region54: #{cls_model_head.2} parent=27 // pred_fallthru
                _
            $region28: #{cls_model_head.2} parent=23 // pred_fallthru
              _
            // Predicated region
            $region29: #{cls_model_head.2} parent=23 // pred_check
              _
            $region30: #{cls_model_head.2} parent=23 // pred_check_branch
              %109 = sbr.rel target = $region32
            $region31: #{cls_model_head.2} parent=23 // pred_region
              %s111 = ssub.s32 256, 1
              loop: start=0, step=1, limit=1
              $region33: #{cls_model_head.2} parent=31 // loop_pre_header
                _
              $region34: #{cls_model_head.2} parent=31 // loop_header
                %s113 = sphi 0, %s117
                %p114 = scmp.ge.s32.totalorder %s113, 1
                %s118 = sphi %s103, %s103
                %s119 = sphi %s98, %s98
              $region35: #{cls_model_head.2} parent=31 // loop_header_branch
                %116 = sbr.rel (%p114) target = $region39
              $region36: #{cls_model_head.2} parent=31 // loop_body
                %v120 = vld [vmem:[%s118] sm:%s111]
                %121 = vst [vmem:[%s119] sm:%s111] %v120
                %v122 = vld [vmem:[%s118 + $0x10] sm:%s111]
                %123 = vst [vmem:[%s119 + $0x8] sm:%s111] %v122
                %v124 = vld [vmem:[%s118 + $0x20] sm:%s111]
                %125 = vst [vmem:[%s119 + $0x10] sm:%s111] %v124
                %v126 = vld [vmem:[%s118 + $0x30] sm:%s111]
                %127 = vst [vmem:[%s119 + $0x18] sm:%s111] %v126
                %v128 = vld [vmem:[%s118 + $0x40] sm:%s111]
                %129 = vst [vmem:[%s119 + $0x20] sm:%s111] %v128
                %v130 = vld [vmem:[%s118 + $0x50] sm:%s111]
                %131 = vst [vmem:[%s119 + $0x28] sm:%s111] %v130
                %v132 = vld [vmem:[%s118 + $0x60] sm:%s111]
                %133 = vst [vmem:[%s119 + $0x30] sm:%s111] %v132
                %v134 = vld [vmem:[%s118 + $0x70] sm:%s111]
                %135 = vst [vmem:[%s119 + $0x38] sm:%s111] %v134
                %v136 = vld [vmem:[%s118 + $0x80] sm:%s111]
                %137 = vst [vmem:[%s119 + $0x40] sm:%s111] %v136
                %v138 = vld [vmem:[%s118 + $0x90] sm:%s111]
                %139 = vst [vmem:[%s119 + $0x48] sm:%s111] %v138
                %v140 = vld [vmem:[%s118 + $0xa0] sm:%s111]
                %141 = vst [vmem:[%s119 + $0x50] sm:%s111] %v140
                %v142 = vld [vmem:[%s118 + $0xb0] sm:%s111]
                %143 = vst [vmem:[%s119 + $0x58] sm:%s111] %v142
                %v144 = vld [vmem:[%s118 + $0xc0] sm:%s111]
                %145 = vst [vmem:[%s119 + $0x60] sm:%s111] %v144
                %v146 = vld [vmem:[%s118 + $0xd0] sm:%s111]
                %147 = vst [vmem:[%s119 + $0x68] sm:%s111] %v146
                %v148 = vld [vmem:[%s118 + $0xe0] sm:%s111]
                %149 = vst [vmem:[%s119 + $0x70] sm:%s111] %v148
                %v150 = vld [vmem:[%s118 + $0xf0] sm:%s111]
                %151 = vst [vmem:[%s119 + $0x78] sm:%s111] %v150
                %v152 = vld [vmem:[%s118 + $0x100] sm:%s111]
                %153 = vst [vmem:[%s119 + $0x80] sm:%s111] %v152
                %v154 = vld [vmem:[%s118 + $0x110] sm:%s111]
                %155 = vst [vmem:[%s119 + $0x88] sm:%s111] %v154
                %v156 = vld [vmem:[%s118 + $0x120] sm:%s111]
                %157 = vst [vmem:[%s119 + $0x90] sm:%s111] %v156
                %v158 = vld [vmem:[%s118 + $0x130] sm:%s111]
                %159 = vst [vmem:[%s119 + $0x98] sm:%s111] %v158
                %v160 = vld [vmem:[%s118 + $0x140] sm:%s111]
                %161 = vst [vmem:[%s119 + $0xa0] sm:%s111] %v160
                %v162 = vld [vmem:[%s118 + $0x150] sm:%s111]
                %163 = vst [vmem:[%s119 + $0xa8] sm:%s111] %v162
                %v164 = vld [vmem:[%s118 + $0x160] sm:%s111]
                %165 = vst [vmem:[%s119 + $0xb0] sm:%s111] %v164
                %v166 = vld [vmem:[%s118 + $0x170] sm:%s111]
                %167 = vst [vmem:[%s119 + $0xb8] sm:%s111] %v166
                %v168 = vld [vmem:[%s118 + $0x180] sm:%s111]
                %169 = vst [vmem:[%s119 + $0xc0] sm:%s111] %v168
                %v170 = vld [vmem:[%s118 + $0x190] sm:%s111]
                %171 = vst [vmem:[%s119 + $0xc8] sm:%s111] %v170
                %v172 = vld [vmem:[%s118 + $0x1a0] sm:%s111]
                %173 = vst [vmem:[%s119 + $0xd0] sm:%s111] %v172
                %v174 = vld [vmem:[%s118 + $0x1b0] sm:%s111]
                %175 = vst [vmem:[%s119 + $0xd8] sm:%s111] %v174
                %v176 = vld [vmem:[%s118 + $0x1c0] sm:%s111]
                %177 = vst [vmem:[%s119 + $0xe0] sm:%s111] %v176
                %v178 = vld [vmem:[%s118 + $0x1d0] sm:%s111]
                %179 = vst [vmem:[%s119 + $0xe8] sm:%s111] %v178
                %v180 = vld [vmem:[%s118 + $0x1e0] sm:%s111]
                %181 = vst [vmem:[%s119 + $0xf0] sm:%s111] %v180
                %v182 = vld [vmem:[%s118 + $0x1f0] sm:%s111]
                %183 = vst [vmem:[%s119 + $0xf8] sm:%s111] %v182
              $region37: #{cls_model_head.2} parent=31 // loop_footer
                %s117 = sadd.s32 1, %s113
              $region38: #{cls_model_head.2} parent=31 // loop_footer_branch
                %112 = sbr.rel target = $region34
              $region39: #{cls_model_head.2} parent=31 // loop_exit
                _
            $region32: #{cls_model_head.2} parent=23 // pred_fallthru
              _
          $region24: #{cls_model_head.2} parent=19 // pred_fallthru
            _
          %260 = vnop
        $region20: #{cls_model_head.2} parent=15 // pred_fallthru
          _
      $region16: #{cls_model_head.2} parent=5 // pred_fallthru
        _
      %p261 = scmp.le.s32.totalorder 1, %s7
      %p262 = scmp.lt.s32.totalorder %s7, 3
      %p263 = pnand %p261, %p262
      %p264 = pneg %p263
      // Predicated region
      $region55: #{cls_model_head.2} parent=5 // pred_check
        _
      $region56: #{cls_model_head.2} parent=5 // pred_check_branch
        %266 = sbr.rel (%p263) target = $region58
      $region57: #{cls_model_head.2} parent=5 // pred_region
        %s267 = ssub.s32 %s7, 1
        %s268 = sand.u32 %s34, 1
        %s269 = sand.u32 %s34, 1
        %s270 = smul.addr %s269, 256
        %s271 = scalar_lea.vmem [#allocation2], %s270
        // Predicated region
        $region59: #{cls_model_head.2} parent=57 // pred_check
          %p272 = pneg %p47
        $region60: #{cls_model_head.2} parent=57 // pred_check_branch
          %274 = sbr.rel (%p272) target = $region62
        $region61: #{cls_model_head.2} parent=57 // pred_region
          _
        $region62: #{cls_model_head.2} parent=57 // pred_fallthru
          _
        %s275 = sand.u32 %s34, 1
        %s276 = sand.u32 %s34, 1
        %s277 = smul.addr %s276, 256
        %s278 = scalar_lea.vmem [#allocation2], %s277
        %p279 = pneg %p47
        %p280 = pneg %p44
        %p281 = pneg %p73
        %p282 = pneg %p70
        %p283 = scmp.lt.s32.totalorder %s16, 0
        %s284 = scalar_select %p283, %s16, 0
        %s285 = smul.addr %s284, 8
        %s286 = scalar_lea.vmem %s1, %s285
        %s287 = smul.u32 4, %s16
        %p288 = scmp.lt.s32.totalorder %s16, 0
        %s289 = scalar_select %p288, %s16, 0
        %s290 = smul.addr %s289, 8
        %s291 = scalar_lea.vmem %s1, %s290
        %p292 = scmp.eq.s32.totalorder %s17, 0
        // Predicated region
        $region63: #{cls_model_head.2} parent=57 // pred_check
          %p293 = pneg %p292
        $region64: #{cls_model_head.2} parent=57 // pred_check_branch
          %295 = sbr.rel (%p293) target = $region66
        $region65: #{cls_model_head.2} parent=57 // pred_region
          %vm296 = vcmask 261120
          %297 = vst.msk [vmem:[%s291] sm:$0xff] %vm296, 0.0
        $region66: #{cls_model_head.2} parent=57 // pred_fallthru
          _
        %v298 = vld [vmem:[%s291] sm:$0xff]
        %v299 = vld [vmem:[%s271] sm:$0xff]
        %v300 = vld [vmem:[%s271 + $0x8] sm:$0xff]
        %v301 = vld [vmem:[%s271 + $0x10] sm:$0xff]
        %v302 = vld [vmem:[%s271 + $0x18] sm:$0xff]
        %v303 = vld [vmem:[%s271 + $0x20] sm:$0xff]
        %v304 = vld [vmem:[%s271 + $0x28] sm:$0xff]
        %v305 = vld [vmem:[%s271 + $0x30] sm:$0xff]
        %v306 = vld [vmem:[%s271 + $0x38] sm:$0xff]
        %v307 = vld [vmem:[%s271 + $0x40] sm:$0xff]
        %v308 = vld [vmem:[%s271 + $0x48] sm:$0xff]
        %v309 = vld [vmem:[%s271 + $0x50] sm:$0xff]
        %v310 = vld [vmem:[%s271 + $0x58] sm:$0xff]
        %v311 = vld [vmem:[%s271 + $0x60] sm:$0xff]
        %v312 = vld [vmem:[%s271 + $0x68] sm:$0xff]
        %v313 = vld [vmem:[%s271 + $0x70] sm:$0xff]
        %v314 = vld [vmem:[%s271 + $0x78] sm:$0xff]
        %v315 = vld [vmem:[%s271 + $0x80] sm:$0xff]
        %v316 = vld [vmem:[%s271 + $0x88] sm:$0xff]
        %v317 = vld [vmem:[%s271 + $0x90] sm:$0xff]
        %v318 = vld [vmem:[%s271 + $0x98] sm:$0xff]
        %v319 = vld [vmem:[%s271 + $0xa0] sm:$0xff]
        %v320 = vld [vmem:[%s271 + $0xa8] sm:$0xff]
        %v321 = vld [vmem:[%s271 + $0xb0] sm:$0xff]
        %v322 = vld [vmem:[%s271 + $0xb8] sm:$0xff]
        %v323 = vld [vmem:[%s271 + $0xc0] sm:$0xff]
        %v324 = vld [vmem:[%s271 + $0xc8] sm:$0xff]
        %v325 = vld [vmem:[%s271 + $0xd0] sm:$0xff]
        %v326 = vld [vmem:[%s271 + $0xd8] sm:$0xff]
        %v327 = vld [vmem:[%s271 + $0xe0] sm:$0xff]
        %v328 = vld [vmem:[%s271 + $0xe8] sm:$0xff]
        %v329 = vld [vmem:[%s271 + $0xf0] sm:$0xff]
        %v330 = vld [vmem:[%s271 + $0xf8] sm:$0xff]
        %331 = vadd.xlane.f32.xlu0 %v299
        %v332 = vpop.xlane.xlu0 %331
        %333 = vadd.xlane.f32.xlu0 %v300
        %v334 = vpop.xlane.xlu0 %333
        %335 = vadd.xlane.f32.xlu0 %v301
        %v336 = vpop.xlane.xlu0 %335
        %337 = vadd.xlane.f32.xlu0 %v302
        %v338 = vpop.xlane.xlu0 %337
        %339 = vadd.xlane.f32.xlu0 %v303
        %v340 = vpop.xlane.xlu0 %339
        %341 = vadd.xlane.f32.xlu0 %v304
        %v342 = vpop.xlane.xlu0 %341
        %343 = vadd.xlane.f32.xlu0 %v305
        %v344 = vpop.xlane.xlu0 %343
        %345 = vadd.xlane.f32.xlu0 %v306
        %v346 = vpop.xlane.xlu0 %345
        %347 = vadd.xlane.f32.xlu0 %v307
        %v348 = vpop.xlane.xlu0 %347
        %349 = vadd.xlane.f32.xlu0 %v308
        %v350 = vpop.xlane.xlu0 %349
        %351 = vadd.xlane.f32.xlu0 %v309
        %v352 = vpop.xlane.xlu0 %351
        %353 = vadd.xlane.f32.xlu0 %v310
        %v354 = vpop.xlane.xlu0 %353
        %355 = vadd.xlane.f32.xlu0 %v311
        %v356 = vpop.xlane.xlu0 %355
        %357 = vadd.xlane.f32.xlu0 %v312
        %v358 = vpop.xlane.xlu0 %357
        %359 = vadd.xlane.f32.xlu0 %v313
        %v360 = vpop.xlane.xlu0 %359
        %361 = vadd.xlane.f32.xlu0 %v314
        %v362 = vpop.xlane.xlu0 %361
        %363 = vadd.xlane.f32.xlu0 %v315
        %v364 = vpop.xlane.xlu0 %363
        %365 = vadd.xlane.f32.xlu0 %v316
        %v366 = vpop.xlane.xlu0 %365
        %367 = vadd.xlane.f32.xlu0 %v317
        %v368 = vpop.xlane.xlu0 %367
        %369 = vadd.xlane.f32.xlu0 %v318
        %v370 = vpop.xlane.xlu0 %369
        %371 = vadd.xlane.f32.xlu0 %v319
        %v372 = vpop.xlane.xlu0 %371
        %373 = vadd.xlane.f32.xlu0 %v320
        %v374 = vpop.xlane.xlu0 %373
        %375 = vadd.xlane.f32.xlu0 %v321
        %v376 = vpop.xlane.xlu0 %375
        %377 = vadd.xlane.f32.xlu0 %v322
        %v378 = vpop.xlane.xlu0 %377
        %379 = vadd.xlane.f32.xlu0 %v323
        %v380 = vpop.xlane.xlu0 %379
        %381 = vadd.xlane.f32.xlu0 %v324
        %v382 = vpop.xlane.xlu0 %381
        %383 = vadd.xlane.f32.xlu0 %v325
        %v384 = vpop.xlane.xlu0 %383
        %385 = vadd.xlane.f32.xlu0 %v326
        %v386 = vpop.xlane.xlu0 %385
        %387 = vadd.xlane.f32.xlu0 %v327
        %v388 = vpop.xlane.xlu0 %387
        %389 = vadd.xlane.f32.xlu0 %v328
        %v390 = vpop.xlane.xlu0 %389
        %391 = vadd.xlane.f32.xlu0 %v329
        %v392 = vpop.xlane.xlu0 %391
        %393 = vadd.xlane.f32.xlu0 %v330
        %v394 = vpop.xlane.xlu0 %393
        %v427 = vlaneseq
        %v428 = vand.u32 %v427, 127
        %v429 = vlaneseq
        %v430 = vshrl.u32 %v429, 7
        %v431 = vsub.s32 %v428, %v430
        %v432 = vrot.slane %v332, %v431
        %v433 = vadd.s32 %v428, 4294967288
        %v434 = vlaneseq
        %v435 = vshrl.u32 %v434, 7
        %v436 = vsub.s32 %v433, %v435
        %v437 = vrot.slane %v334, %v436
        %vm438 = vcmask 130112
        %v439 = vsel %vm438, %v437, %v432
        %v440 = vadd.s32 %v428, 4294967280
        %v441 = vlaneseq
        %v442 = vshrl.u32 %v441, 7
        %v443 = vsub.s32 %v440, %v442
        %v444 = vrot.slane %v336, %v443
        %vm445 = vcmask 195712
        %v446 = vsel %vm445, %v444, %v439
        %v447 = vadd.s32 %v428, 4294967272
        %v448 = vlaneseq
        %v449 = vshrl.u32 %v448, 7
        %v450 = vsub.s32 %v447, %v449
        %v451 = vrot.slane %v338, %v450
        %vm452 = vcmask 261312
        %v453 = vsel %vm452, %v451, %v446
        %v454 = vlaneseq
        %v455 = vshrl.u32 %v454, 7
        %v456 = vsub.s32 %v428, %v455
        %v457 = vrot.slane %v340, %v456
        %v458 = vlaneseq
        %v459 = vshrl.u32 %v458, 7
        %v460 = vsub.s32 %v433, %v459
        %v461 = vrot.slane %v342, %v460
        %v462 = vsel %vm438, %v461, %v457
        %v463 = vlaneseq
        %v464 = vshrl.u32 %v463, 7
        %v465 = vsub.s32 %v440, %v464
        %v466 = vrot.slane %v344, %v465
        %v467 = vsel %vm445, %v466, %v462
        %v468 = vlaneseq
        %v469 = vshrl.u32 %v468, 7
        %v470 = vsub.s32 %v447, %v469
        %v471 = vrot.slane %v346, %v470
        %v472 = vsel %vm452, %v471, %v467
        %v473 = vlaneseq
        %v474 = vshrl.u32 %v473, 7
        %v475 = vsub.s32 %v428, %v474
        %v476 = vrot.slane %v348, %v475
        %v477 = vlaneseq
        %v478 = vshrl.u32 %v477, 7
        %v479 = vsub.s32 %v433, %v478
        %v480 = vrot.slane %v350, %v479
        %v481 = vsel %vm438, %v480, %v476
        %v482 = vlaneseq
        %v483 = vshrl.u32 %v482, 7
        %v484 = vsub.s32 %v440, %v483
        %v485 = vrot.slane %v352, %v484
        %v486 = vsel %vm445, %v485, %v481
        %v487 = vlaneseq
        %v488 = vshrl.u32 %v487, 7
        %v489 = vsub.s32 %v447, %v488
        %v490 = vrot.slane %v354, %v489
        %v491 = vsel %vm452, %v490, %v486
        %v492 = vlaneseq
        %v493 = vshrl.u32 %v492, 7
        %v494 = vsub.s32 %v428, %v493
        %v495 = vrot.slane %v356, %v494
        %v496 = vlaneseq
        %v497 = vshrl.u32 %v496, 7
        %v498 = vsub.s32 %v433, %v497
        %v499 = vrot.slane %v358, %v498
        %v500 = vsel %vm438, %v499, %v495
        %v501 = vlaneseq
        %v502 = vshrl.u32 %v501, 7
        %v503 = vsub.s32 %v440, %v502
        %v504 = vrot.slane %v360, %v503
        %v505 = vsel %vm445, %v504, %v500
        %v506 = vlaneseq
        %v507 = vshrl.u32 %v506, 7
        %v508 = vsub.s32 %v447, %v507
        %v509 = vrot.slane %v362, %v508
        %v510 = vsel %vm452, %v509, %v505
        %v511 = vlaneseq
        %v512 = vshrl.u32 %v511, 7
        %v513 = vsub.s32 %v428, %v512
        %v514 = vrot.slane %v364, %v513
        %v515 = vlaneseq
        %v516 = vshrl.u32 %v515, 7
        %v517 = vsub.s32 %v433, %v516
        %v518 = vrot.slane %v366, %v517
        %v519 = vsel %vm438, %v518, %v514
        %v520 = vlaneseq
        %v521 = vshrl.u32 %v520, 7
        %v522 = vsub.s32 %v440, %v521
        %v523 = vrot.slane %v368, %v522
        %v524 = vsel %vm445, %v523, %v519
        %v525 = vlaneseq
        %v526 = vshrl.u32 %v525, 7
        %v527 = vsub.s32 %v447, %v526
        %v528 = vrot.slane %v370, %v527
        %v529 = vsel %vm452, %v528, %v524
        %v530 = vlaneseq
        %v531 = vshrl.u32 %v530, 7
        %v532 = vsub.s32 %v428, %v531
        %v533 = vrot.slane %v372, %v532
        %v534 = vlaneseq
        %v535 = vshrl.u32 %v534, 7
        %v536 = vsub.s32 %v433, %v535
        %v537 = vrot.slane %v374, %v536
        %v538 = vsel %vm438, %v537, %v533
        %v539 = vlaneseq
        %v540 = vshrl.u32 %v539, 7
        %v541 = vsub.s32 %v440, %v540
        %v542 = vrot.slane %v376, %v541
        %v543 = vsel %vm445, %v542, %v538
        %v544 = vlaneseq
        %v545 = vshrl.u32 %v544, 7
        %v546 = vsub.s32 %v447, %v545
        %v547 = vrot.slane %v378, %v546
        %v548 = vsel %vm452, %v547, %v543
        %v549 = vlaneseq
        %v550 = vshrl.u32 %v549, 7
        %v551 = vsub.s32 %v428, %v550
        %v552 = vrot.slane %v380, %v551
        %v553 = vlaneseq
        %v554 = vshrl.u32 %v553, 7
        %v555 = vsub.s32 %v433, %v554
        %v556 = vrot.slane %v382, %v555
        %v557 = vsel %vm438, %v556, %v552
        %v558 = vlaneseq
        %v559 = vshrl.u32 %v558, 7
        %v560 = vsub.s32 %v440, %v559
        %v561 = vrot.slane %v384, %v560
        %v562 = vsel %vm445, %v561, %v557
        %v563 = vlaneseq
        %v564 = vshrl.u32 %v563, 7
        %v565 = vsub.s32 %v447, %v564
        %v566 = vrot.slane %v386, %v565
        %v567 = vsel %vm452, %v566, %v562
        %v568 = vlaneseq
        %v569 = vshrl.u32 %v568, 7
        %v570 = vsub.s32 %v428, %v569
        %v571 = vrot.slane %v388, %v570
        %v572 = vlaneseq
        %v573 = vshrl.u32 %v572, 7
        %v574 = vsub.s32 %v433, %v573
        %v575 = vrot.slane %v390, %v574
        %v576 = vsel %vm438, %v575, %v571
        %v577 = vlaneseq
        %v578 = vshrl.u32 %v577, 7
        %v579 = vsub.s32 %v440, %v578
        %v580 = vrot.slane %v392, %v579
        %v581 = vsel %vm445, %v580, %v576
        %v582 = vlaneseq
        %v583 = vshrl.u32 %v582, 7
        %v584 = vsub.s32 %v447, %v583
        %v585 = vrot.slane %v394, %v584
        %v586 = vsel %vm452, %v585, %v581
        %vm587 = vcmask 1041409
        %v588 = vsel %vm587, %v472, %v453
        %vm589 = vcmask 1042434
        %v590 = vsel %vm589, %v491, %v588
        %vm591 = vcmask 1043459
        %v592 = vsel %vm591, %v510, %v590
        %vm593 = vcmask 1044484
        %v594 = vsel %vm593, %v529, %v592
        %vm595 = vcmask 1045509
        %v596 = vsel %vm595, %v548, %v594
        %vm597 = vcmask 1046534
        %v598 = vsel %vm597, %v567, %v596
        %vm599 = vcmask 1047559
        %v600 = vsel %vm599, %v586, %v598
        %v602 = vadd.f32 %v298, %v600
        %vm603 = vcmask 261120
        %604 = vst.msk [vmem:[%s291] sm:$0xff] %vm603, %v602
        %p605 = scmp.lt.s32.totalorder %s16, 0
        %s606 = scalar_select %p605, %s16, 0
        %s607 = smul.addr %s606, 8
        %s608 = scalar_lea.vmem %s1, %s607
        // Predicated region
        $region67: #{cls_model_head.2} parent=57 // pred_check
          %p609 = pneg %p70
        $region68: #{cls_model_head.2} parent=57 // pred_check_branch
          %611 = sbr.rel (%p609) target = $region70
        $region69: #{cls_model_head.2} parent=57 // pred_region
          _
        $region70: #{cls_model_head.2} parent=57 // pred_fallthru
          _
        // Predicated region
        $region71: #{cls_model_head.2} parent=57 // pred_check
          %p612 = pneg %p70
        $region72: #{cls_model_head.2} parent=57 // pred_check_branch
          %614 = sbr.rel (%p612) target = $region74
        $region73: #{cls_model_head.2} parent=57 // pred_region
          %p615 = scmp.lt.s32.totalorder %s16, 0
          %s616 = scalar_select %p615, %s16, 0
          %s617 = smul.addr %s616, 8
          %s618 = scalar_lea.vmem %s1, %s617
        $region74: #{cls_model_head.2} parent=57 // pred_fallthru
          _
      $region58: #{cls_model_head.2} parent=5 // pred_fallthru
        _
      %p619 = scmp.le.s32.totalorder 2, %s7
      // Predicated region
      $region75: #{cls_model_head.2} parent=5 // pred_check
        %p620 = pneg %p619
      $region76: #{cls_model_head.2} parent=5 // pred_check_branch
        %622 = sbr.rel (%p620) target = $region78
      $region77: #{cls_model_head.2} parent=5 // pred_region
        %s623 = ssub.s32 %s7, 2
      $region78: #{cls_model_head.2} parent=5 // pred_fallthru
        _
    $region6: #{cls_model_head.2} parent=1 // loop_footer
      %s11 = sadd.s32 1, %s7
    $region7: #{cls_model_head.2} parent=1 // loop_footer_branch
      %6 = sbr.rel target = $region3
    $region8: #{cls_model_head.2} parent=1 // loop_exit
      _

// kernel: cls_model_head.3
$region0: #{cls_model_head.3}
  #allocation0 [shape = 'u32[]', space=smem, size = 0x4, offset = 0x4, fixed_abs, tag = 'smem constant byte address 0x4 - core index']
  #allocation1 [shape = 'u32[144,128]{1,0:T(1,128)}', space=vmem, size = 0x12000, scoped, tag = 'internal scratch']
  %s0 = inlined_call_operand.vmem [shape: f32[8,32], index: 0, kind: input, shape index: {}]
  %s1 = inlined_call_operand.vmem [shape: f32[32,128], index: 1, kind: input, shape index: {}]
  %s2 = inlined_call_operand.vmem [shape: f32[1,128], index: 2, kind: input, shape index: {}]
  %s3 = inlined_call_operand.vmem [shape: f32[1,128], index: 3, kind: input, shape index: {}]
  %s4 = inlined_call_operand.vmem [shape: f32[1,128], index: 4, kind: input, shape index: {}]
  %s5 = inlined_call_operand.vmem [shape: f32[128,128], index: 5, kind: input, shape index: {}]
  %s6 = inlined_call_operand.vmem [shape: f32[1,128], index: 6, kind: input, shape index: {}]
  %s7 = inlined_call_operand.vmem [shape: f32[128,128], index: 7, kind: input, shape index: {}]
  %s8 = inlined_call_operand.vmem [shape: f32[1,128], index: 8, kind: input, shape index: {}]
  %s9 = inlined_call_operand.vmem [shape: f32[1,128], index: 9, kind: input, shape index: {}]
  %s10 = inlined_call_operand.vmem [shape: f32[1,128], index: 10, kind: input, shape index: {}]
  %s11 = inlined_call_operand.hbm [shape: f32[8,128], index: 11, kind: output, shape index: {0}]
  %s12 = inlined_call_operand.hbm [shape: f32[8,128], index: 12, kind: output, shape index: {1}]
  %13 = xla_tuple %s11, %s12
  %s14 = sld [smem:[#allocation0]]
  $region62: #{cls_model_head.3} parent=0
    _
  %s16 = ssub.s32 1, %s14
  %s17 = scalar_select 0, %s16, %s14
  $region1: #{cls_model_head.3} parent=0
    #allocation2 [shape = 'u8[4096]{0}', space=vmem, size = 0x1000, scoped, tag = 'output window, operand 0, single buffered']
    #allocation3 [shape = 's32[1]{0}', space=sflag, size = 0x4, scoped, tag = 'scoped memory for cls_model_head.3']
    #allocation4 [shape = 'u8[4096]{0}', space=vmem, size = 0x1000, scoped, tag = 'output window, operand 1, single buffered']
    #allocation5 [shape = 's32[1]{0}', space=sflag, size = 0x4, scoped, tag = 'scoped memory for cls_model_head.3']
    %18 = vsyncpa [#allocation3], 0
    %19 = vsyncpa [#allocation5], 0
    // Predicated region
    $region2: #{cls_model_head.3} parent=1 // pred_check
      _
    $region3: #{cls_model_head.3} parent=1 // pred_check_branch
      %21 = sbr.rel (0) target = $region5
    $region4: #{cls_model_head.3} parent=1 // pred_region
      _
    $region5: #{cls_model_head.3} parent=1 // pred_fallthru
      _
    // Predicated region
    $region6: #{cls_model_head.3} parent=1 // pred_check
      _
    $region7: #{cls_model_head.3} parent=1 // pred_check_branch
      %23 = sbr.rel (0) target = $region9
    $region8: #{cls_model_head.3} parent=1 // pred_region
      _
    $region9: #{cls_model_head.3} parent=1 // pred_fallthru
      _
    // Predicated region
    $region10: #{cls_model_head.3} parent=1 // pred_check
      _
    $region11: #{cls_model_head.3} parent=1 // pred_check_branch
      %25 = sbr.rel (0) target = $region13
    $region12: #{cls_model_head.3} parent=1 // pred_region
      _
    $region13: #{cls_model_head.3} parent=1 // pred_fallthru
      _
    // Predicated region
    $region14: #{cls_model_head.3} parent=1 // pred_check
      _
    $region15: #{cls_model_head.3} parent=1 // pred_check_branch
      %27 = sbr.rel (0) target = $region17
    $region16: #{cls_model_head.3} parent=1 // pred_region
      _
    $region17: #{cls_model_head.3} parent=1 // pred_fallthru
      _
    // Predicated region
    $region18: #{cls_model_head.3} parent=1 // pred_check
      _
    $region19: #{cls_model_head.3} parent=1 // pred_check_branch
      %29 = sbr.rel (0) target = $region21
    $region20: #{cls_model_head.3} parent=1 // pred_region
      _
    $region21: #{cls_model_head.3} parent=1 // pred_fallthru
      _
    // Predicated region
    $region22: #{cls_model_head.3} parent=1 // pred_check
      _
    $region23: #{cls_model_head.3} parent=1 // pred_check_branch
      %31 = sbr.rel (0) target = $region25
    $region24: #{cls_model_head.3} parent=1 // pred_region
      _
    $region25: #{cls_model_head.3} parent=1 // pred_fallthru
      _
    // Predicated region
    $region26: #{cls_model_head.3} parent=1 // pred_check
      _
    $region27: #{cls_model_head.3} parent=1 // pred_check_branch
      %33 = sbr.rel (0) target = $region29
    $region28: #{cls_model_head.3} parent=1 // pred_region
      _
    $region29: #{cls_model_head.3} parent=1 // pred_fallthru
      _
    // Predicated region
    $region30: #{cls_model_head.3} parent=1 // pred_check
      _
    $region31: #{cls_model_head.3} parent=1 // pred_check_branch
      %35 = sbr.rel (0) target = $region33
    $region32: #{cls_model_head.3} parent=1 // pred_region
      _
    $region33: #{cls_model_head.3} parent=1 // pred_fallthru
      _
    // Predicated region
    $region34: #{cls_model_head.3} parent=1 // pred_check
      _
    $region35: #{cls_model_head.3} parent=1 // pred_check_branch
      %37 = sbr.rel (0) target = $region37
    $region36: #{cls_model_head.3} parent=1 // pred_region
      _
    $region37: #{cls_model_head.3} parent=1 // pred_fallthru
      _
    // Predicated region
    $region38: #{cls_model_head.3} parent=1 // pred_check
      _
    $region39: #{cls_model_head.3} parent=1 // pred_check_branch
      %39 = sbr.rel (0) target = $region41
    $region40: #{cls_model_head.3} parent=1 // pred_region
      _
    $region41: #{cls_model_head.3} parent=1 // pred_fallthru
      _
    // Predicated region
    $region42: #{cls_model_head.3} parent=1 // pred_check
      _
    $region43: #{cls_model_head.3} parent=1 // pred_check_branch
      %41 = sbr.rel (0) target = $region45
    $region44: #{cls_model_head.3} parent=1 // pred_region
      _
    $region45: #{cls_model_head.3} parent=1 // pred_fallthru
      _
    %v42 = vld [vmem:[%s0] sm:$0xff]
    %v43 = vld [vmem:[%s1] sm:$0xff]
    %v44 = vld [vmem:[%s1 + $0x8] sm:$0xff]
    %v45 = vld [vmem:[%s1 + $0x10] sm:$0xff]
    %v46 = vld [vmem:[%s1 + $0x18] sm:$0xff]
    %v47 = vld [vmem:[%s2] sm:$0x1]
    %v49 = vlaneseq
    %v50 = vshrl.u32 %v49, 7
    %v51 = vsub.s32 0, %v50
    %v52 = vrot.slane %v47, %v51
    %vm54 = vcmask 261120
    %v56 = vsel %vm54, %v42, 0
    %58 = vmatprep.subr.mxu0 0.0
    %59 = vmatpush1.msra.mxu0 0.0
    %60 = vmatprep.subr.mxu0 0.0
    %61 = vmatpush1.msra.mxu0 0.0
    %62 = vmatprep.subr.mxu0 0.0
    %63 = vmatpush1.msra.mxu0 0.0
    %64 = vmatprep.subr.mxu0 0.0
    %65 = vmatpush1.msra.mxu0 0.0
    %66 = vmatprep.subr.mxu0 0.0
    %67 = vmatpush1.msra.mxu0 0.0
    %68 = vmatprep.subr.mxu0 0.0
    %69 = vmatpush1.msra.mxu0 0.0
    %70 = vmatprep.subr.mxu0 0.0
    %71 = vmatpush1.msra.mxu0 0.0
    %72 = vmatprep.subr.mxu0 0.0
    %73 = vmatpush1.msra.mxu0 0.0
    %74 = vmatprep.subr.mxu0 0.0
    %75 = vmatpush1.msra.mxu0 0.0
    %76 = vmatprep.subr.mxu0 0.0
    %77 = vmatpush1.msra.mxu0 0.0
    %78 = vmatprep.subr.mxu0 0.0
    %79 = vmatpush1.msra.mxu0 0.0
    %80 = vmatprep.subr.mxu0 0.0
    %81 = vmatpush1.msra.mxu0 0.0
    %82 = vmatprep.subr.mxu0 0.0
    %83 = vmatpush1.msra.mxu0 %v46
    %84 = vmatprep.subr.mxu0 0.0
    %85 = vmatpush1.msra.mxu0 %v45
    %86 = vmatprep.subr.mxu0 0.0
    %87 = vmatpush1.msra.mxu0 %v44
    %88 = vmatprep.subr.mxu0 0.0
    %89 = vmatpush1.msra.mxu0 %v43
    %90 = vmatprep.subr.mxu0 0.0
    %91 = vmatpush2.msra.mxu0 0.0
    %92 = vmatprep.subr.mxu0 0.0
    %93 = vmatpush2.msra.mxu0 0.0
    %94 = vmatprep.subr.mxu0 0.0
    %95 = vmatpush2.msra.mxu0 0.0
    %96 = vmatprep.subr.mxu0 0.0
    %97 = vmatpush2.msra.mxu0 0.0
    %98 = vmatprep.subr.mxu0 0.0
    %99 = vmatpush2.msra.mxu0 0.0
    %100 = vmatprep.subr.mxu0 0.0
    %101 = vmatpush2.msra.mxu0 0.0
    %102 = vmatprep.subr.mxu0 0.0
    %103 = vmatpush2.msra.mxu0 0.0
    %104 = vmatprep.subr.mxu0 0.0
    %105 = vmatpush2.msra.mxu0 0.0
    %106 = vmatprep.subr.mxu0 0.0
    %107 = vmatpush2.msra.mxu0 0.0
    %108 = vmatprep.subr.mxu0 0.0
    %109 = vmatpush2.msra.mxu0 0.0
    %110 = vmatprep.subr.mxu0 0.0
    %111 = vmatpush2.msra.mxu0 0.0
    %112 = vmatprep.subr.mxu0 0.0
    %113 = vmatpush2.msra.mxu0 0.0
    %114 = vmatprep.subr.mxu0 0.0
    %115 = vmatpush2.msra.mxu0 0.0
    %116 = vmatprep.subr.mxu0 0.0
    %117 = vmatpush2.msra.mxu0 0.0
    %118 = vmatprep.subr.mxu0 0.0
    %119 = vmatpush2.msra.mxu0 0.0
    %120 = vmatprep.subr.mxu0 0.0
    %121 = vmatpush2.msra.mxu0 0.0
    %122 = vmatprep.mubr.f32.mxu0 0.0
    %123 = vmatmul.mubr.f32.gmra.mxu0 %v56
    %v124 = vpop.f32.mrf.mxu0
    %v125 = vadd.f32 %v52, %v124
    %v126 = vpop.f32.mrf.mxu0
    %127 = vdwg.mxu0
    %v128 = vrot.slane %v125, 4
    %v129 = vadd.f32 %v125, %v128
    %v130 = vrot.slane %v129, 2
    %v131 = vadd.f32 %v129, %v130
    %v132 = vrot.slane %v131, 1
    %v133 = vadd.f32 %v131, %v132
    %v134 = vrcp.pop 8.0
    %v135 = vmul.f32 %v133, %v134
    %v136 = vsub.f32 %v125, %v135
    %v137 = vmul.f32 %v136, %v136
    %v138 = vrot.slane %v137, 4
    %v139 = vadd.f32 %v137, %v138
    %v140 = vrot.slane %v139, 2
    %v141 = vadd.f32 %v139, %v140
    %v142 = vrot.slane %v141, 1
    %v143 = vadd.f32 %v141, %v142
    %v144 = vmul.f32 %v143, %v134
    %v145 = vld [vmem:[%s3] sm:$0x1]
    %v146 = vadd.f32 %v144, 1e-05
    %v147 = vrsqrt.pop %v146
    %v148 = vmul.f32 %v145, %v147
    %v149 = vld [vmem:[%s4] sm:$0x1]
    %v150 = vmul.f32 %v148, %v135
    %v151 = vsub.f32 %v149, %v150
    %v153 = vlaneseq
    %v154 = vshrl.u32 %v153, 7
    %v155 = vsub.s32 0, %v154
    %v156 = vrot.slane %v148, %v155
    %v158 = vmul.f32 %v156, %v125
    %v160 = vlaneseq
    %v161 = vshrl.u32 %v160, 7
    %v162 = vsub.s32 0, %v161
    %v163 = vrot.slane %v151, %v162
    %v165 = vadd.f32 %v158, %v163
    %v166 = vld [vmem:[%s5] sm:$0xff]
    %v167 = vld [vmem:[%s5 + $0x8] sm:$0xff]
    %v168 = vld [vmem:[%s5 + $0x10] sm:$0xff]
    %v169 = vld [vmem:[%s5 + $0x18] sm:$0xff]
    %v170 = vld [vmem:[%s5 + $0x20] sm:$0xff]
    %v171 = vld [vmem:[%s5 + $0x28] sm:$0xff]
    %v172 = vld [vmem:[%s5 + $0x30] sm:$0xff]
    %v173 = vld [vmem:[%s5 + $0x38] sm:$0xff]
    %v174 = vld [vmem:[%s5 + $0x40] sm:$0xff]
    %v175 = vld [vmem:[%s5 + $0x48] sm:$0xff]
    %v176 = vld [vmem:[%s5 + $0x50] sm:$0xff]
    %v177 = vld [vmem:[%s5 + $0x58] sm:$0xff]
    %v178 = vld [vmem:[%s5 + $0x60] sm:$0xff]
    %v179 = vld [vmem:[%s5 + $0x68] sm:$0xff]
    %v180 = vld [vmem:[%s5 + $0x70] sm:$0xff]
    %v181 = vld [vmem:[%s5 + $0x78] sm:$0xff]
    %v182 = vld [vmem:[%s6] sm:$0x1]
    %v184 = vlaneseq
    %v185 = vshrl.u32 %v184, 7
    %v186 = vsub.s32 0, %v185
    %v187 = vrot.slane %v182, %v186
    %189 = vmatprep.subr.mxu0 0.0
    %190 = vmatpush1.msra.mxu0 %v181
    %191 = vmatprep.subr.mxu0 0.0
    %192 = vmatpush1.msra.mxu0 %v180
    %193 = vmatprep.subr.mxu0 0.0
    %194 = vmatpush1.msra.mxu0 %v179
    %195 = vmatprep.subr.mxu0 0.0
    %196 = vmatpush1.msra.mxu0 %v178
    %197 = vmatprep.subr.mxu0 0.0
    %198 = vmatpush1.msra.mxu0 %v177
    %199 = vmatprep.subr.mxu0 0.0
    %200 = vmatpush1.msra.mxu0 %v176
    %201 = vmatprep.subr.mxu0 0.0
    %202 = vmatpush1.msra.mxu0 %v175
    %203 = vmatprep.subr.mxu0 0.0
    %204 = vmatpush1.msra.mxu0 %v174
    %205 = vmatprep.subr.mxu0 0.0
    %206 = vmatpush1.msra.mxu0 %v173
    %207 = vmatprep.subr.mxu0 0.0
    %208 = vmatpush1.msra.mxu0 %v172
    %209 = vmatprep.subr.mxu0 0.0
    %210 = vmatpush1.msra.mxu0 %v171
    %211 = vmatprep.subr.mxu0 0.0
    %212 = vmatpush1.msra.mxu0 %v170
    %213 = vmatprep.subr.mxu0 0.0
    %214 = vmatpush1.msra.mxu0 %v169
    %215 = vmatprep.subr.mxu0 0.0
    %216 = vmatpush1.msra.mxu0 %v168
    %217 = vmatprep.subr.mxu0 0.0
    %218 = vmatpush1.msra.mxu0 %v167
    %219 = vmatprep.subr.mxu0 0.0
    %220 = vmatpush1.msra.mxu0 %v166
    %221 = vmatprep.subr.mxu0 0.0
    %222 = vmatpush2.msra.mxu0 0.0
    %223 = vmatprep.subr.mxu0 0.0
    %224 = vmatpush2.msra.mxu0 0.0
    %225 = vmatprep.subr.mxu0 0.0
    %226 = vmatpush2.msra.mxu0 0.0
    %227 = vmatprep.subr.mxu0 0.0
    %228 = vmatpush2.msra.mxu0 0.0
    %229 = vmatprep.subr.mxu0 0.0
    %230 = vmatpush2.msra.mxu0 0.0
    %231 = vmatprep.subr.mxu0 0.0
    %232 = vmatpush2.msra.mxu0 0.0
    %233 = vmatprep.subr.mxu0 0.0
    %234 = vmatpush2.msra.mxu0 0.0
    %235 = vmatprep.subr.mxu0 0.0
    %236 = vmatpush2.msra.mxu0 0.0
    %237 = vmatprep.subr.mxu0 0.0
    %238 = vmatpush2.msra.mxu0 0.0
    %239 = vmatprep.subr.mxu0 0.0
    %240 = vmatpush2.msra.mxu0 0.0
    %241 = vmatprep.subr.mxu0 0.0
    %242 = vmatpush2.msra.mxu0 0.0
    %243 = vmatprep.subr.mxu0 0.0
    %244 = vmatpush2.msra.mxu0 0.0
    %245 = vmatprep.subr.mxu0 0.0
    %246 = vmatpush2.msra.mxu0 0.0
    %247 = vmatprep.subr.mxu0 0.0
    %248 = vmatpush2.msra.mxu0 0.0
    %249 = vmatprep.subr.mxu0 0.0
    %250 = vmatpush2.msra.mxu0 0.0
    %251 = vmatprep.subr.mxu0 0.0
    %252 = vmatpush2.msra.mxu0 0.0
    %253 = vmatprep.mubr.f32.mxu0 0.0
    %254 = vmatmul.mubr.f32.gmra.mxu0 %v165
    %v255 = vpop.f32.mrf.mxu0
    %v256 = vadd.f32 %v187, %v255
    %v257 = vpop.f32.mrf.mxu0
    %258 = vdwg.mxu0
    %259 = vst [vmem:[#allocation2] sm:$0xff] %v256
    %v260 = vld [vmem:[%s7] sm:$0xff]
    %v261 = vld [vmem:[%s7 + $0x8] sm:$0xff]
    %v262 = vld [vmem:[%s7 + $0x10] sm:$0xff]
    %v263 = vld [vmem:[%s7 + $0x18] sm:$0xff]
    %v264 = vld [vmem:[%s7 + $0x20] sm:$0xff]
    %v265 = vld [vmem:[%s7 + $0x28] sm:$0xff]
    %v266 = vld [vmem:[%s7 + $0x30] sm:$0xff]
    %v267 = vld [vmem:[%s7 + $0x38] sm:$0xff]
    %v268 = vld [vmem:[%s7 + $0x40] sm:$0xff]
    %v269 = vld [vmem:[%s7 + $0x48] sm:$0xff]
    %v270 = vld [vmem:[%s7 + $0x50] sm:$0xff]
    %v271 = vld [vmem:[%s7 + $0x58] sm:$0xff]
    %v272 = vld [vmem:[%s7 + $0x60] sm:$0xff]
    %v273 = vld [vmem:[%s7 + $0x68] sm:$0xff]
    %v274 = vld [vmem:[%s7 + $0x70] sm:$0xff]
    %v275 = vld [vmem:[%s7 + $0x78] sm:$0xff]
    %v276 = vld [vmem:[%s8] sm:$0x1]
    %v278 = vlaneseq
    %v279 = vshrl.u32 %v278, 7
    %v280 = vsub.s32 0, %v279
    %v281 = vrot.slane %v276, %v280
    %283 = vmatprep.subr.mxu0 0.0
    %284 = vmatpush1.msra.mxu0 %v275
    %285 = vmatprep.subr.mxu0 0.0
    %286 = vmatpush1.msra.mxu0 %v274
    %287 = vmatprep.subr.mxu0 0.0
    %288 = vmatpush1.msra.mxu0 %v273
    %289 = vmatprep.subr.mxu0 0.0
    %290 = vmatpush1.msra.mxu0 %v272
    %291 = vmatprep.subr.mxu0 0.0
    %292 = vmatpush1.msra.mxu0 %v271
    %293 = vmatprep.subr.mxu0 0.0
    %294 = vmatpush1.msra.mxu0 %v270
    %295 = vmatprep.subr.mxu0 0.0
    %296 = vmatpush1.msra.mxu0 %v269
    %297 = vmatprep.subr.mxu0 0.0
    %298 = vmatpush1.msra.mxu0 %v268
    %299 = vmatprep.subr.mxu0 0.0
    %300 = vmatpush1.msra.mxu0 %v267
    %301 = vmatprep.subr.mxu0 0.0
    %302 = vmatpush1.msra.mxu0 %v266
    %303 = vmatprep.subr.mxu0 0.0
    %304 = vmatpush1.msra.mxu0 %v265
    %305 = vmatprep.subr.mxu0 0.0
    %306 = vmatpush1.msra.mxu0 %v264
    %307 = vmatprep.subr.mxu0 0.0
    %308 = vmatpush1.msra.mxu0 %v263
    %309 = vmatprep.subr.mxu0 0.0
    %310 = vmatpush1.msra.mxu0 %v262
    %311 = vmatprep.subr.mxu0 0.0
    %312 = vmatpush1.msra.mxu0 %v261
    %313 = vmatprep.subr.mxu0 0.0
    %314 = vmatpush1.msra.mxu0 %v260
    %315 = vmatprep.subr.mxu0 0.0
    %316 = vmatpush2.msra.mxu0 0.0
    %317 = vmatprep.subr.mxu0 0.0
    %318 = vmatpush2.msra.mxu0 0.0
    %319 = vmatprep.subr.mxu0 0.0
    %320 = vmatpush2.msra.mxu0 0.0
    %321 = vmatprep.subr.mxu0 0.0
    %322 = vmatpush2.msra.mxu0 0.0
    %323 = vmatprep.subr.mxu0 0.0
    %324 = vmatpush2.msra.mxu0 0.0
    %325 = vmatprep.subr.mxu0 0.0
    %326 = vmatpush2.msra.mxu0 0.0
    %327 = vmatprep.subr.mxu0 0.0
    %328 = vmatpush2.msra.mxu0 0.0
    %329 = vmatprep.subr.mxu0 0.0
    %330 = vmatpush2.msra.mxu0 0.0
    %331 = vmatprep.subr.mxu0 0.0
    %332 = vmatpush2.msra.mxu0 0.0
    %333 = vmatprep.subr.mxu0 0.0
    %334 = vmatpush2.msra.mxu0 0.0
    %335 = vmatprep.subr.mxu0 0.0
    %336 = vmatpush2.msra.mxu0 0.0
    %337 = vmatprep.subr.mxu0 0.0
    %338 = vmatpush2.msra.mxu0 0.0
    %339 = vmatprep.subr.mxu0 0.0
    %340 = vmatpush2.msra.mxu0 0.0
    %341 = vmatprep.subr.mxu0 0.0
    %342 = vmatpush2.msra.mxu0 0.0
    %343 = vmatprep.subr.mxu0 0.0
    %344 = vmatpush2.msra.mxu0 0.0
    %345 = vmatprep.subr.mxu0 0.0
    %346 = vmatpush2.msra.mxu0 0.0
    %347 = vmatprep.mubr.f32.mxu0 0.0
    %348 = vmatmul.mubr.f32.gmra.mxu0 %v125
    %v349 = vpop.f32.mrf.mxu0
    %v350 = vadd.f32 %v281, %v349
    %v351 = vpop.f32.mrf.mxu0
    %352 = vdwg.mxu0
    %v353 = vrot.slane %v350, 4
    %v354 = vadd.f32 %v350, %v353
    %v355 = vrot.slane %v354, 2
    %v356 = vadd.f32 %v354, %v355
    %v357 = vrot.slane %v356, 1
    %v358 = vadd.f32 %v356, %v357
    %v359 = vmul.f32 %v358, %v134
    %v360 = vsub.f32 %v350, %v359
    %v361 = vmul.f32 %v360, %v360
    %v362 = vrot.slane %v361, 4
    %v363 = vadd.f32 %v361, %v362
    %v364 = vrot.slane %v363, 2
    %v365 = vadd.f32 %v363, %v364
    %v366 = vrot.slane %v365, 1
    %v367 = vadd.f32 %v365, %v366
    %v368 = vmul.f32 %v367, %v134
    %v369 = vld [vmem:[%s9] sm:$0x1]
    %v370 = vadd.f32 %v368, 1e-05
    %v371 = vrsqrt.pop %v370
    %v372 = vmul.f32 %v369, %v371
    %v373 = vld [vmem:[%s10] sm:$0x1]
    %v374 = vmul.f32 %v372, %v359
    %v375 = vsub.f32 %v373, %v374
    %v377 = vlaneseq
    %v378 = vshrl.u32 %v377, 7
    %v379 = vsub.s32 0, %v378
    %v380 = vrot.slane %v372, %v379
    %v382 = vmul.f32 %v380, %v350
    %v384 = vlaneseq
    %v385 = vshrl.u32 %v384, 7
    %v386 = vsub.s32 0, %v385
    %v387 = vrot.slane %v375, %v386
    %v389 = vadd.f32 %v382, %v387
    %390 = vst [vmem:[#allocation4] sm:$0xff] %v389
    // Predicated region
    $region46: #{cls_model_head.3} parent=1 // pred_check
      _
    $region47: #{cls_model_head.3} parent=1 // pred_check_branch
      %392 = sbr.rel (0) target = $region49
    $region48: #{cls_model_head.3} parent=1 // pred_region
      %s394 = ssub.s32 128, 128
      %395 = vsyncadd [#allocation3], %s394
      %s397 = sshll.u32 [#allocation2], 4
      %s398 = int_to_ptr.vmem [resolvable:$true] %s397
      %400 = dma.vmem_to_hbm [thread:$0]  %s398, 128, %s11, [#allocation3]
    $region49: #{cls_model_head.3} parent=1 // pred_fallthru
      _
    // Predicated region
    $region50: #{cls_model_head.3} parent=1 // pred_check
      _
    $region51: #{cls_model_head.3} parent=1 // pred_check_branch
      %402 = sbr.rel (0) target = $region53
    $region52: #{cls_model_head.3} parent=1 // pred_region
      %s404 = ssub.s32 128, 128
      %405 = vsyncadd [#allocation5], %s404
      %s407 = sshll.u32 [#allocation4], 4
      %s408 = int_to_ptr.vmem [resolvable:$true] %s407
      %410 = dma.vmem_to_hbm [thread:$0]  %s408, 128, %s12, [#allocation5]
    $region53: #{cls_model_head.3} parent=1 // pred_fallthru
      _
    // Predicated region
    $region54: #{cls_model_head.3} parent=1 // pred_check
      _
    $region55: #{cls_model_head.3} parent=1 // pred_check_branch
      %412 = sbr.rel (0) target = $region57
    $region56: #{cls_model_head.3} parent=1 // pred_region
      %413 = dma.done [#allocation3], 128
    $region57: #{cls_model_head.3} parent=1 // pred_fallthru
      _
    // Predicated region
    $region58: #{cls_model_head.3} parent=1 // pred_check
      _
    $region59: #{cls_model_head.3} parent=1 // pred_check_branch
      %415 = sbr.rel (0) target = $region61
    $region60: #{cls_model_head.3} parent=1 // pred_region
      %416 = dma.done [#allocation5], 128
    $region61: #{cls_model_head.3} parent=1 // pred_fallthru
      _
    %417 = vsyncpa [#allocation3], 1
    %418 = vsyncpa [#allocation5], 1

</llo_original>
